<compile_context>
chip_gen: v7x
topology: tpu7x:2x2x1
jax: 0.10.0
libtpu: 0.0.40
codegen_flags: <defaults>
</compile_context>

<pallas_src>
import jax
import jax.numpy as jnp
from jax.experimental import pallas as pl
from jax.experimental.pallas import tpu as pltpu


def _add_pos_kernel(x_ref, pos_ref, o_ref):
    # x_ref / o_ref: (tb, tn) lane-dense tiles of the flattened (B, S*D) input.
    # pos_ref:       (1,  tn) matching slice of the flattened positional table;
    #                broadcasts over the sublane (row) axis inside the VPU add.
    o_ref[...] = x_ref[...] + pos_ref[...]


def _choose_tiles(B, N, itemsize, target_bytes=2 * 1024 * 1024):
    """Pick the largest lane-dense block with block_bytes ~= target_bytes.

    Block dims always satisfy the TPU (8, 128) rule: each of the last two dims
    is either a multiple of (8, 128) respectively or equal to the full extent.
    """
    if N * itemsize <= target_bytes:
        tn = N                                    # full lane width, no column grid
        rows = target_bytes // (tn * itemsize)
        if rows >= B:
            tb = B                                # whole array in one block
        else:
            tb = max(8, (rows // 8) * 8)          # multiple of 8 rows
            if tb > B:
                tb = B
    else:
        # A single flattened row already exceeds the budget: tile lanes too.
        tb = B if B < 8 else 8
        tn = max(128, (target_bytes // (tb * itemsize)) // 128 * 128)
        tn = min(tn, N)
    return tb, tn


def learned_positional_encoding(x, pos_embedding):
    """x: (B, S, D), pos_embedding: (S, D). Returns x + pos_embedding (broadcast over B)."""
    B, S, D = x.shape
    assert pos_embedding.shape == (S, D)
    pos = pos_embedding.astype(x.dtype)  # matches PyTorch `.to(self.dtype)`

    # Flatten to a lane-dense 2D slab (free relayout for row-major data).
    N = S * D
    x2 = x.reshape(B, N)
    pos2 = pos.reshape(1, N)

    itemsize = jnp.dtype(x.dtype).itemsize
    tb, tn = _choose_tiles(B, N, itemsize)
    grid = (pl.cdiv(B, tb), pl.cdiv(N, tn))

    out2 = pl.pallas_call(
        _add_pos_kernel,
        out_shape=jax.ShapeDtypeStruct((B, N), x.dtype),
        grid_spec=pltpu.PrefetchScalarGridSpec(
            num_scalar_prefetch=0,
            grid=grid,
            in_specs=[
                pl.BlockSpec((tb, tn), lambda i, j: (i, j)),   # x tile
                pl.BlockSpec((1, tn), lambda i, j: (0, j)),    # pos slice (resident across rows)
            ],
            out_specs=pl.BlockSpec((tb, tn), lambda i, j: (i, j)),
        ),
        compiler_params=pltpu.CompilerParams(
            dimension_semantics=("parallel", "parallel"),
        ),
    )(x2, pos2)

    # TODO(synk): in a full model, fuse this add into the consumer kernel (or
    # alias the output onto x) to avoid a separate HBM read+write pass over x.
    return out2.reshape(B, S, D)


if __name__ == "__main__":
    key = jax.random.PRNGKey(0)
    kx, kw, kx2, kw2 = jax.random.split(key, 4)

    # Module config: contextLength=8, embeddingDim=32, dtype=float32, batch=2.
    context_length, embedding_dim, batch = 8, 32, 2
    pos_embedding = jax.random.normal(kw, (context_length, embedding_dim), dtype=jnp.float32)
    x = jax.random.normal(kx, (batch, context_length, embedding_dim), dtype=jnp.float32)

    out = jax.block_until_ready(learned_positional_encoding(x, pos_embedding))
    ref = x + pos_embedding[None, :, :]
    assert out.shape == x.shape
    assert jnp.allclose(out, ref, atol=1e-6), "mismatch vs reference (small)"

    # Second check at a medium shape that exercises the row-tiled, multi-step
    # grid path (tb=16 rows of a 32768-lane slab, grid=(4, 1)).
    B2, S2, D2 = 64, 256, 128
    pos2 = jax.random.normal(kw2, (S2, D2), dtype=jnp.float32)
    x2 = jax.random.normal(kx2, (B2, S2, D2), dtype=jnp.float32)
    out2 = jax.block_until_ready(learned_positional_encoding(x2, pos2))
    ref2 = x2 + pos2[None, :, :]
    assert jnp.allclose(out2, ref2, atol=1e-6), "mismatch vs reference (tiled)"

    print("KERNEL_OK")
</pallas_src>

<mosaic_0001>
module attributes {stable_mosaic.version = 11 : i64} {
  func.func @_add_pos_kernel(%arg0: i32, %arg1: i32, %arg2: memref<2x256xf32, #tpu.memory_space<vmem>>, %arg3: memref<1x256xf32, #tpu.memory_space<vmem>>, %arg4: memref<2x256xf32, #tpu.memory_space<vmem>>) attributes {dimension_semantics = [#tpu.dimension_semantics<parallel>, #tpu.dimension_semantics<parallel>], iteration_bounds = array<i64: 1, 1>, scalar_prefetch = 0 : i64, scratch_operands = 0 : i64, tpu.core_type = #tpu.core_type<tc>, window_params = [{transform_indices = @transform_0, window_bounds = array<i64: 2, 256>}, {transform_indices = @transform_1, window_bounds = array<i64: 1, 256>}, {transform_indices = @transform_2, window_bounds = array<i64: 2, 256>}]} {
    %c0 = arith.constant 0 : index
    %c0_0 = arith.constant 0 : index
    %0 = vector.load %arg2[%c0, %c0_0] : memref<2x256xf32, #tpu.memory_space<vmem>>, vector<2x256xf32>
    %c0_1 = arith.constant 0 : index
    %c0_2 = arith.constant 0 : index
    %1 = vector.load %arg3[%c0_1, %c0_2] : memref<1x256xf32, #tpu.memory_space<vmem>>, vector<1x256xf32>
    %2 = vector.broadcast %1 : vector<1x256xf32> to vector<2x256xf32>
    %3 = arith.addf %0, %2 : vector<2x256xf32>
    %c0_3 = arith.constant 0 : index
    %c0_4 = arith.constant 0 : index
    %4 = vector.load %arg4[%c0_3, %c0_4] : memref<2x256xf32, #tpu.memory_space<vmem>>, vector<2x256xf32>
    tpu.vector_store %arg4[%c0_3, %c0_4], %3 {strides = array<i32>} : memref<2x256xf32, #tpu.memory_space<vmem>>, vector<2x256xf32>,
    return
  }
  func.func @transform_0(%arg0: i32, %arg1: i32) -> (i32, i32) {
    %c0_i32 = arith.constant 0 : i32
    return %arg0, %arg1 : i32, i32
  }
  func.func @transform_1(%arg0: i32, %arg1: i32) -> (i32, i32) {
    %c0_i32 = arith.constant 0 : i32
    %c0_i32_0 = arith.constant 0 : i32
    return %c0_i32, %arg1 : i32, i32
  }
  func.func @transform_2(%arg0: i32, %arg1: i32) -> (i32, i32) {
    %c0_i32 = arith.constant 0 : i32
    return %arg0, %arg1 : i32, i32
  }
}

</mosaic_0001>

<llo_original>
// kernel: tpu_custom_call.1
$region0: #{tpu_custom_call.1}
  #allocation0 [shape = 'u32[]', space=smem, size = 0x4, offset = 0x4, fixed_abs, tag = 'smem constant byte address 0x4 - core index']
  #allocation1 [shape = 'u32[144,128]{1,0:T(1,128)}', space=vmem, size = 0x12000, scoped, tag = 'internal scratch']
  %s0 = inlined_call_operand.hbm [shape: f32[2,256], index: 0, kind: input, shape index: {}]
  %s1 = inlined_call_operand.vmem [shape: f32[1,256], index: 1, kind: input, shape index: {}]
  %s2 = inlined_call_operand.hbm [shape: f32[2,256], index: 2, kind: output, shape index: {}]
  %s3 = sld [smem:[#allocation0]]
  $region22: #{tpu_custom_call.1} parent=0
    _
  %s5 = ssub.s32 1, %s3
  %s6 = scalar_select 0, %s5, %s3
  $region1: #{tpu_custom_call.1} parent=0
    #allocation2 [shape = 'u8[2048]{0}', space=vmem, size = 0x800, scoped, tag = 'input window, operand 0, single buffered']
    #allocation3 [shape = 's32[1]{0}', space=sflag, size = 0x4, scoped, tag = 'scoped memory for tpu_custom_call.1']
    #allocation4 [shape = 's32[1]{0}', space=sflag, size = 0x4, scoped, tag = 'scoped memory for tpu_custom_call.1']
    #allocation5 [shape = 'u8[2048]{0}', space=vmem, size = 0x800, scoped, tag = 'output window, operand 0, single buffered']
    %7 = vsyncpa [#allocation3], 0
    %8 = vsyncpa [#allocation4], 0
    // Predicated region
    $region2: #{tpu_custom_call.1} parent=1 // pred_check
      _
    $region3: #{tpu_custom_call.1} parent=1 // pred_check_branch
      %10 = sbr.rel (0) target = $region5
    $region4: #{tpu_custom_call.1} parent=1 // pred_region
      %s12 = ssub.s32 64, 64
      %13 = vsyncadd [#allocation3], %s12
      %s15 = sshll.u32 [#allocation2], 4
      %s16 = int_to_ptr.vmem [resolvable:$true] %s15
      %18 = dma.hbm_to_vmem [thread:$0]  %s0, 64, %s16, [#allocation3]
    $region5: #{tpu_custom_call.1} parent=1 // pred_fallthru
      _
    // Predicated region
    $region6: #{tpu_custom_call.1} parent=1 // pred_check
      _
    $region7: #{tpu_custom_call.1} parent=1 // pred_check_branch
      %20 = sbr.rel (0) target = $region9
    $region8: #{tpu_custom_call.1} parent=1 // pred_region
      _
    $region9: #{tpu_custom_call.1} parent=1 // pred_fallthru
      _
    // Predicated region
    $region10: #{tpu_custom_call.1} parent=1 // pred_check
      _
    $region11: #{tpu_custom_call.1} parent=1 // pred_check_branch
      %22 = sbr.rel (0) target = $region13
    $region12: #{tpu_custom_call.1} parent=1 // pred_region
      %23 = dma.done [#allocation3], 64
    $region13: #{tpu_custom_call.1} parent=1 // pred_fallthru
      _
    %v24 = vld [vmem:[#allocation2] sm:$0xf]
    %v25 = vld [vmem:[%s1] sm:$0x3]
    %v27 = vlaneseq
    %v28 = vshrl.u32 %v27, 7
    %v29 = vsub.s32 0, %v28
    %v30 = vrot.slane %v25, %v29
    %v31 = vlaneseq
    %v32 = vshrl.u32 %v31, 7
    %v33 = vsub.s32 1, %v32
    %v34 = vrot.slane %v25, %v33
    %v35 = vcombine.low %v30, %v34
    %v37 = vunpack.c.l.s4 1983009808
    %v38 = vunpack.c.0.s8 %v37
    %v39 = vlaneseq
    %v40 = vshrl.u32 %v39, 7
    %v41 = vsub.s32 %v38, %v40
    %v42 = vrot.slane %v35, %v41
    %v44 = vadd.f32 %v24, %v42
    %45 = vst [vmem:[#allocation5] sm:$0xf] %v44
    // Predicated region
    $region14: #{tpu_custom_call.1} parent=1 // pred_check
      _
    $region15: #{tpu_custom_call.1} parent=1 // pred_check_branch
      %47 = sbr.rel (0) target = $region17
    $region16: #{tpu_custom_call.1} parent=1 // pred_region
      %s49 = ssub.s32 64, 64
      %50 = vsyncadd [#allocation4], %s49
      %s52 = sshll.u32 [#allocation5], 4
      %s53 = int_to_ptr.vmem [resolvable:$true] %s52
      %55 = dma.vmem_to_hbm [thread:$0]  %s53, 64, %s2, [#allocation4]
    $region17: #{tpu_custom_call.1} parent=1 // pred_fallthru
      _
    // Predicated region
    $region18: #{tpu_custom_call.1} parent=1 // pred_check
      _
    $region19: #{tpu_custom_call.1} parent=1 // pred_check_branch
      %57 = sbr.rel (0) target = $region21
    $region20: #{tpu_custom_call.1} parent=1 // pred_region
      %58 = dma.done [#allocation4], 64
    $region21: #{tpu_custom_call.1} parent=1 // pred_fallthru
      _
    %59 = vsyncpa [#allocation3], 1
    %60 = vsyncpa [#allocation4], 1

</llo_original>
